<compile_context>
chip_gen: v6e
topology: v6e:2x2x1
jax: 0.10.0
libtpu: 0.0.40
codegen_flags: <defaults>
</compile_context>

<pallas_src>
import functools

import jax
import jax.numpy as jnp
from jax.experimental import pallas as pl
from jax.experimental.pallas import tpu as pltpu


# ------------------------------ tiling helpers -------------------------------
def _round_up(x, m):
    return ((x + m - 1) // m) * m


def _tile_and_pad(dim, align, cap):
    """Pick a tile size (multiple of `align`, at most `cap`) and padded dim."""
    tile = min(cap, _round_up(dim, align))
    return tile, _round_up(dim, tile)


# ----------------------------- Pallas kernel ---------------------------------
def _linear_kernel(x_ref, w_ref, b_ref, o_ref, acc_ref):
    # Grid: (M//tm, N//tn, K//tk); K is the innermost ("arbitrary") axis.
    k = pl.program_id(2)

    @pl.when(k == 0)
    def _():
        acc_ref[...] = jnp.zeros_like(acc_ref)

    acc_ref[...] += jnp.dot(
        x_ref[...], w_ref[...], preferred_element_type=jnp.float32)

    @pl.when(k == pl.num_programs(2) - 1)
    def _():
        # Bias add only in the finalize branch (once per output tile), f32.
        o_ref[...] = (acc_ref[...] + b_ref[...].astype(jnp.float32)
                      ).astype(o_ref.dtype)


@functools.partial(jax.jit, static_argnames=("out_features",))
def _linear_call(x2d, w_pad, b_pad, *, out_features):
    """y = x2d @ W^T + b, tiled Pallas matmul on pre-padded (K,N) weight.

    x2d   : (M, K)   activations (unpadded)
    w_pad : (Kp, Np) weight, already transposed to [in, out] and zero-padded
    b_pad : (1, Np)  bias, zero-padded
    """
    M, K = x2d.shape
    Kp, Np = w_pad.shape

    # Tile sizes (lane-dense: K/N tiles are multiples of 128).
    tm, Mp = _tile_and_pad(M, 8, 128)
    tk = min(512, Kp)   # w_pad was padded to a multiple of this in __init__
    tn = min(256, Np)

    # Pad activations to the padded K and tile-aligned M (zeros contribute 0).
    x_p = x2d
    if (Mp, Kp) != (M, K):
        x_p = jnp.pad(x2d, ((0, Mp - M), (0, Kp - K)))

    grid = (Mp // tm, Np // tn, Kp // tk)
    itemsize = jnp.dtype(x2d.dtype).itemsize

    out = pl.pallas_call(
        _linear_kernel,
        out_shape=jax.ShapeDtypeStruct((Mp, Np), x2d.dtype),
        grid=grid,
        in_specs=[
            pl.BlockSpec((tm, tk), lambda i, j, k: (i, k)),
            pl.BlockSpec((tk, tn), lambda i, j, k: (k, j)),
            pl.BlockSpec((1, tn), lambda i, j, k: (0, j)),
        ],
        out_specs=pl.BlockSpec((tm, tn), lambda i, j, k: (i, j)),
        scratch_shapes=[pltpu.VMEM((tm, tn), jnp.float32)],
        compiler_params=pltpu.CompilerParams(
            dimension_semantics=("parallel", "parallel", "arbitrary")),
        cost_estimate=pl.CostEstimate(
            flops=2 * Mp * Kp * Np,
            transcendentals=0,
            bytes_accessed=itemsize * (Mp * Kp + Kp * Np + Np + Mp * Np)),
    )(x_p, w_pad, b_pad)

    # Slice away the padding (fuses into the jitted dispatch).
    return out[:M, :out_features]


# ------------------------- module-level wrappers ------------------------------
class DumpedLinear:
    """Deterministic stand-in for the wrapped nn.Module (nn.Linear(H, H))."""

    def __init__(self, hidden, key):
        kw, kb = jax.random.split(key)
        bound = 1.0 / jnp.sqrt(hidden)
        # PyTorch nn.Linear parameter shapes.
        self.weight = jax.random.uniform(
            kw, (hidden, hidden), jnp.float32, -bound, bound)  # [out, in]
        self.bias = jax.random.uniform(
            kb, (hidden,), jnp.float32, -bound, bound)          # [out]
        self.out_features = hidden

        # Pre-transpose ([out,in] -> [in,out]) and zero-pad to lane-dense
        # tile multiples ONCE, off the hot path.
        K = N = hidden
        tk, Kp = _tile_and_pad(K, 128, 512)
        tn, Np = _tile_and_pad(N, 128, 256)
        del tk, tn  # tiles are re-derived from padded shapes inside the jit
        w_t = self.weight.T  # (K, N)
        self.w_pad = jnp.zeros((Kp, Np), jnp.float32).at[:K, :N].set(w_t)
        self.b_pad = jnp.zeros((1, Np), jnp.float32).at[0, :N].set(self.bias)

    def __call__(self, x):
        # x: [batch, seq, hidden] -> flatten leading dims for the matmul.
        B, S, H = x.shape
        y2d = _linear_call(x.reshape(B * S, H), self.w_pad, self.b_pad,
                           out_features=self.out_features)
        return y2d.reshape(B, S, self.out_features)


class DumpModule:
    """forward(inputs) -> dumped_module(inputs); dump hooks are host-side only."""

    def __init__(self, dumped_module, dump_path="./dump/"):
        self.dumped_module = dumped_module
        self.dump_path = dump_path
        self.dump_reg_hooks = []
        # TODO(synk): init_dump / reg_dump_hook / save_tensor_to_text are
        # host-side forward-hook file-dump machinery (np.savetxt / np.savez);
        # no device compute to translate.

    def __call__(self, inputs):
        return self.dumped_module(inputs)


# ----------------------------------- main -------------------------------------
if __name__ == "__main__":
    key = jax.random.PRNGKey(0)
    k_in, k_mod = jax.random.split(key)

    batch, seq, hidden = 2, 8, 32
    x = jax.random.normal(k_in, (batch, seq, hidden), jnp.float32)

    dumped = DumpedLinear(hidden, k_mod)
    module = DumpModule(dumped)

    y = module(x)
    y = jax.block_until_ready(y)

    # Sanity check against plain-JAX reference (PyTorch nn.Linear semantics).
    ref = x.reshape(-1, hidden) @ dumped.weight.T + dumped.bias
    ref = ref.reshape(batch, seq, hidden)
    assert y.shape == ref.shape, "shape mismatch vs reference"
    assert jnp.allclose(y, ref, atol=1e-5, rtol=1e-5), "mismatch vs reference"

    print("KERNEL_OK")
</pallas_src>

<mosaic_0001>
module attributes {stable_mosaic.version = 11 : i64} {
  func.func @_linear_kernel(%arg0: i32, %arg1: i32, %arg2: i32, %arg3: memref<16x128xf32, #tpu.memory_space<vmem>>, %arg4: memref<128x128xf32, #tpu.memory_space<vmem>>, %arg5: memref<1x128xf32, #tpu.memory_space<vmem>>, %arg6: memref<16x128xf32, #tpu.memory_space<vmem>>, %arg7: memref<16x128xf32, #tpu.memory_space<vmem>>) attributes {dimension_semantics = [#tpu.dimension_semantics<parallel>, #tpu.dimension_semantics<parallel>, #tpu.dimension_semantics<arbitrary>], iteration_bounds = array<i64: 1, 1, 1>, scalar_prefetch = 0 : i64, scratch_operands = 1 : i64, tpu.core_type = #tpu.core_type<tc>, window_params = [{transform_indices = @transform_0, window_bounds = array<i64: 16, 128>}, {transform_indices = @transform_1, window_bounds = array<i64: 128, 128>}, {transform_indices = @transform_2, window_bounds = array<i64: 1, 128>}, {transform_indices = @transform_3, window_bounds = array<i64: 16, 128>}]} {
    %c0_i32 = arith.constant 0 : i32
    %0 = arith.cmpi eq, %arg2, %c0_i32 : i32
    %1 = arith.extui %0 : i1 to i32
    %c0_i32_0 = arith.constant 0 : i32
    %2 = arith.cmpi ne, %1, %c0_i32_0 : i32
    scf.if %2 {
      %cst_10 = arith.constant 0.000000e+00 : f32
      %12 = vector.broadcast %cst_10 : f32 to vector<16x128xf32>
      %c0_11 = arith.constant 0 : index
      %c0_12 = arith.constant 0 : index
      %13 = vector.load %arg7[%c0_11, %c0_12] : memref<16x128xf32, #tpu.memory_space<vmem>>, vector<16x128xf32>
      tpu.vector_store %arg7[%c0_11, %c0_12], %12 {strides = array<i32>} : memref<16x128xf32, #tpu.memory_space<vmem>>, vector<16x128xf32>,
    } else {
    }
    %c0 = arith.constant 0 : index
    %c0_1 = arith.constant 0 : index
    %3 = vector.load %arg7[%c0, %c0_1] : memref<16x128xf32, #tpu.memory_space<vmem>>, vector<16x128xf32>
    %c0_2 = arith.constant 0 : index
    %c0_3 = arith.constant 0 : index
    %4 = vector.load %arg3[%c0_2, %c0_3] : memref<16x128xf32, #tpu.memory_space<vmem>>, vector<16x128xf32>
    %c0_4 = arith.constant 0 : index
    %c0_5 = arith.constant 0 : index
    %5 = vector.load %arg4[%c0_4, %c0_5] : memref<128x128xf32, #tpu.memory_space<vmem>>, vector<128x128xf32>
    %cst = arith.constant dense<0.000000e+00> : vector<16x128xf32>
    %6 = tpu.matmul %4, %5, %cst {dimension_numbers = #tpu.dot_dimension_numbers<[1], [0], [0], [1], [0, 0, 1, 1], [], []>} : vector<16x128xf32>, vector<128x128xf32>, vector<16x128xf32> -> vector<16x128xf32>
    %7 = arith.addf %3, %6 : vector<16x128xf32>
    %c0_6 = arith.constant 0 : index
    %c0_7 = arith.constant 0 : index
    %8 = vector.load %arg7[%c0_6, %c0_7] : memref<16x128xf32, #tpu.memory_space<vmem>>, vector<16x128xf32>
    tpu.vector_store %arg7[%c0_6, %c0_7], %7 {strides = array<i32>} : memref<16x128xf32, #tpu.memory_space<vmem>>, vector<16x128xf32>,
    %c0_i32_8 = arith.constant 0 : i32
    %9 = arith.cmpi eq, %arg2, %c0_i32_8 : i32
    %10 = arith.extui %9 : i1 to i32
    %c0_i32_9 = arith.constant 0 : i32
    %11 = arith.cmpi ne, %10, %c0_i32_9 : i32
    scf.if %11 {
      %c0_10 = arith.constant 0 : index
      %c0_11 = arith.constant 0 : index
      %12 = vector.load %arg7[%c0_10, %c0_11] : memref<16x128xf32, #tpu.memory_space<vmem>>, vector<16x128xf32>
      %c0_12 = arith.constant 0 : index
      %c0_13 = arith.constant 0 : index
      %13 = vector.load %arg5[%c0_12, %c0_13] : memref<1x128xf32, #tpu.memory_space<vmem>>, vector<1x128xf32>
      %14 = vector.broadcast %13 : vector<1x128xf32> to vector<16x128xf32>
      %15 = arith.addf %12, %14 : vector<16x128xf32>
      %c0_14 = arith.constant 0 : index
      %c0_15 = arith.constant 0 : index
      %16 = vector.load %arg6[%c0_14, %c0_15] : memref<16x128xf32, #tpu.memory_space<vmem>>, vector<16x128xf32>
      tpu.vector_store %arg6[%c0_14, %c0_15], %15 {strides = array<i32>} : memref<16x128xf32, #tpu.memory_space<vmem>>, vector<16x128xf32>,
    } else {
    }
    return
  }
  func.func @transform_0(%arg0: i32, %arg1: i32, %arg2: i32) -> (i32, i32) {
    %c0_i32 = arith.constant 0 : i32
    return %arg0, %arg2 : i32, i32
  }
  func.func @transform_1(%arg0: i32, %arg1: i32, %arg2: i32) -> (i32, i32) {
    %c0_i32 = arith.constant 0 : i32
    return %arg2, %arg1 : i32, i32
  }
  func.func @transform_2(%arg0: i32, %arg1: i32, %arg2: i32) -> (i32, i32) {
    %c0_i32 = arith.constant 0 : i32
    %c0_i32_0 = arith.constant 0 : i32
    return %c0_i32, %arg1 : i32, i32
  }
  func.func @transform_3(%arg0: i32, %arg1: i32, %arg2: i32) -> (i32, i32) {
    %c0_i32 = arith.constant 0 : i32
    return %arg0, %arg1 : i32, i32
  }
}

</mosaic_0001>

<llo_original>
// kernel: _linear_call.1
$region0: #{_linear_call.1}
  #allocation0 [shape = 'u32[]', space=smem, size = 0x4, offset = 0x4, fixed_abs, tag = 'smem constant byte address 0x4 - core index']
  #allocation1 [shape = 'u32[144,128]{1,0:T(1,128)}', space=vmem, size = 0x12000, scoped, tag = 'internal scratch']
  #allocation2 [shape = 'f32[16,128]{1,0:T(8,128)}', space=vmem, size = 0x2000, scoped, tag = 'scratch operand']
  %s0 = inlined_call_operand.vmem [shape: f32[16,128], index: 0, kind: input, shape index: {}]
  %s1 = inlined_call_operand.hbm [shape: f32[128,128], index: 1, kind: input, shape index: {}]
  %s2 = inlined_call_operand.vmem [shape: f32[1,128], index: 2, kind: input, shape index: {}]
  %s3 = inlined_call_operand.hbm [shape: f32[16,128], index: 3, kind: output, shape index: {}]
  %s4 = sld [smem:[#allocation0]]
  $region34: #{_linear_call.1} parent=0
    _
  %s6 = ssub.s32 1, %s4
  %s7 = scalar_select 0, %s6, %s4
  $region1: #{_linear_call.1} parent=0
    #allocation3 [shape = 'u8[65536]{0}', space=vmem, size = 0x10000, scoped, tag = 'input window, operand 1, single buffered']
    #allocation4 [shape = 's32[1]{0}', space=sflag, size = 0x4, scoped, tag = 'scoped memory for _linear_call.1']
    #allocation5 [shape = 's32[1]{0}', space=sflag, size = 0x4, scoped, tag = 'scoped memory for _linear_call.1']
    #allocation6 [shape = 'u8[8192]{0}', space=vmem, size = 0x2000, scoped, tag = 'output window, operand 0, single buffered']
    %8 = vsyncpa [#allocation4], 0
    %9 = vsyncpa [#allocation5], 0
    // Predicated region
    $region2: #{_linear_call.1} parent=1 // pred_check
      _
    $region3: #{_linear_call.1} parent=1 // pred_check_branch
      %11 = sbr.rel (0) target = $region5
    $region4: #{_linear_call.1} parent=1 // pred_region
      _
    $region5: #{_linear_call.1} parent=1 // pred_fallthru
      _
    // Predicated region
    $region6: #{_linear_call.1} parent=1 // pred_check
      _
    $region7: #{_linear_call.1} parent=1 // pred_check_branch
      %13 = sbr.rel (0) target = $region9
    $region8: #{_linear_call.1} parent=1 // pred_region
      %s15 = ssub.s32 2048, 2048
      %16 = vsyncadd [#allocation4], %s15
      %s17 = sshll.u32 [#allocation3], 4
      %s18 = int_to_ptr.vmem [resolvable:$true] %s17
      %23 = dma.hbm_to_vmem [thread:$0]  %s1, 2048, %s18, [#allocation4], 128, 128, 8
    $region9: #{_linear_call.1} parent=1 // pred_fallthru
      _
    // Predicated region
    $region10: #{_linear_call.1} parent=1 // pred_check
      _
    $region11: #{_linear_call.1} parent=1 // pred_check_branch
      %25 = sbr.rel (0) target = $region13
    $region12: #{_linear_call.1} parent=1 // pred_region
      _
    $region13: #{_linear_call.1} parent=1 // pred_fallthru
      _
    // Predicated region
    $region14: #{_linear_call.1} parent=1 // pred_check
      _
    $region15: #{_linear_call.1} parent=1 // pred_check_branch
      %27 = sbr.rel (0) target = $region17
    $region16: #{_linear_call.1} parent=1 // pred_region
      %28 = dma.done [#allocation4], 2048
    $region17: #{_linear_call.1} parent=1 // pred_fallthru
      _
    %p29 = scmp.eq.s32.totalorder 0, 0
    // Predicated region
    $region18: #{_linear_call.1} parent=1 // pred_check
      %p30 = pneg %p29
    $region19: #{_linear_call.1} parent=1 // pred_check_branch
      %32 = sbr.rel (%p30) target = $region21
    $region20: #{_linear_call.1} parent=1 // pred_region
      %33 = vst [vmem:[#allocation2] sm:$0xff] 0.0
      %34 = vst [vmem:[#allocation2 + $0x8] sm:$0xff] 0.0
    $region21: #{_linear_call.1} parent=1 // pred_fallthru
      _
    %v35 = vld [vmem:[#allocation2] sm:$0xff]
    %v36 = vld [vmem:[#allocation2 + $0x8] sm:$0xff]
    %v37 = vld [vmem:[%s0] sm:$0xff]
    %v38 = vld [vmem:[%s0 + $0x8] sm:$0xff]
    %v39 = vld [vmem:[#allocation3] sm:$0xff]
    %v40 = vld [vmem:[#allocation3 + $0x8] sm:$0xff]
    %v41 = vld [vmem:[#allocation3 + $0x10] sm:$0xff]
    %v42 = vld [vmem:[#allocation3 + $0x18] sm:$0xff]
    %v43 = vld [vmem:[#allocation3 + $0x20] sm:$0xff]
    %v44 = vld [vmem:[#allocation3 + $0x28] sm:$0xff]
    %v45 = vld [vmem:[#allocation3 + $0x30] sm:$0xff]
    %v46 = vld [vmem:[#allocation3 + $0x38] sm:$0xff]
    %v47 = vld [vmem:[#allocation3 + $0x40] sm:$0xff]
    %v48 = vld [vmem:[#allocation3 + $0x48] sm:$0xff]
    %v49 = vld [vmem:[#allocation3 + $0x50] sm:$0xff]
    %v50 = vld [vmem:[#allocation3 + $0x58] sm:$0xff]
    %v51 = vld [vmem:[#allocation3 + $0x60] sm:$0xff]
    %v52 = vld [vmem:[#allocation3 + $0x68] sm:$0xff]
    %v53 = vld [vmem:[#allocation3 + $0x70] sm:$0xff]
    %v54 = vld [vmem:[#allocation3 + $0x78] sm:$0xff]
    %55 = vmatprep.subr.mxu0 0.0
    %56 = vmatpush1.msra.mxu0 %v54
    %57 = vmatprep.subr.mxu0 0.0
    %58 = vmatpush1.msra.mxu0 %v53
    %59 = vmatprep.subr.mxu0 0.0
    %60 = vmatpush1.msra.mxu0 %v52
    %61 = vmatprep.subr.mxu0 0.0
    %62 = vmatpush1.msra.mxu0 %v51
    %63 = vmatprep.subr.mxu0 0.0
    %64 = vmatpush1.msra.mxu0 %v50
    %65 = vmatprep.subr.mxu0 0.0
    %66 = vmatpush1.msra.mxu0 %v49
    %67 = vmatprep.subr.mxu0 0.0
    %68 = vmatpush1.msra.mxu0 %v48
    %69 = vmatprep.subr.mxu0 0.0
    %70 = vmatpush1.msra.mxu0 %v47
    %71 = vmatprep.subr.mxu0 0.0
    %72 = vmatpush1.msra.mxu0 %v46
    %73 = vmatprep.subr.mxu0 0.0
    %74 = vmatpush1.msra.mxu0 %v45
    %75 = vmatprep.subr.mxu0 0.0
    %76 = vmatpush1.msra.mxu0 %v44
    %77 = vmatprep.subr.mxu0 0.0
    %78 = vmatpush1.msra.mxu0 %v43
    %79 = vmatprep.subr.mxu0 0.0
    %80 = vmatpush1.msra.mxu0 %v42
    %81 = vmatprep.subr.mxu0 0.0
    %82 = vmatpush1.msra.mxu0 %v41
    %83 = vmatprep.subr.mxu0 0.0
    %84 = vmatpush1.msra.mxu0 %v40
    %85 = vmatprep.subr.mxu0 0.0
    %86 = vmatpush1.msra.mxu0 %v39
    %87 = vmatprep.subr.mxu0 0.0
    %88 = vmatpush2.msra.mxu0 0.0
    %89 = vmatprep.subr.mxu0 0.0
    %90 = vmatpush2.msra.mxu0 0.0
    %91 = vmatprep.subr.mxu0 0.0
    %92 = vmatpush2.msra.mxu0 0.0
    %93 = vmatprep.subr.mxu0 0.0
    %94 = vmatpush2.msra.mxu0 0.0
    %95 = vmatprep.subr.mxu0 0.0
    %96 = vmatpush2.msra.mxu0 0.0
    %97 = vmatprep.subr.mxu0 0.0
    %98 = vmatpush2.msra.mxu0 0.0
    %99 = vmatprep.subr.mxu0 0.0
    %100 = vmatpush2.msra.mxu0 0.0
    %101 = vmatprep.subr.mxu0 0.0
    %102 = vmatpush2.msra.mxu0 0.0
    %103 = vmatprep.subr.mxu0 0.0
    %104 = vmatpush2.msra.mxu0 0.0
    %105 = vmatprep.subr.mxu0 0.0
    %106 = vmatpush2.msra.mxu0 0.0
    %107 = vmatprep.subr.mxu0 0.0
    %108 = vmatpush2.msra.mxu0 0.0
    %109 = vmatprep.subr.mxu0 0.0
    %110 = vmatpush2.msra.mxu0 0.0
    %111 = vmatprep.subr.mxu0 0.0
    %112 = vmatpush2.msra.mxu0 0.0
    %113 = vmatprep.subr.mxu0 0.0
    %114 = vmatpush2.msra.mxu0 0.0
    %115 = vmatprep.subr.mxu0 0.0
    %116 = vmatpush2.msra.mxu0 0.0
    %117 = vmatprep.subr.mxu0 0.0
    %118 = vmatpush2.msra.mxu0 0.0
    %119 = vmatprep.mubr.f32.mxu0 0.0
    %120 = vmatmul.mubr.f32.gmra.mxu0 %v37
    %v121 = vpop.f32.mrf.mxu0
    %v122 = vadd.f32 0.0, %v121
    %v123 = vpop.f32.mrf.mxu0
    %124 = vmatprep.mubr.f32.mxu0 0.0
    %125 = vmatmul.mubr.f32.gmra.mxu0 %v38
    %v126 = vpop.f32.mrf.mxu0
    %v127 = vadd.f32 0.0, %v126
    %v128 = vpop.f32.mrf.mxu0
    %129 = vdwg.mxu0
    %v130 = vadd.f32 %v35, %v122
    %v131 = vadd.f32 %v36, %v127
    %132 = vst [vmem:[#allocation2] sm:$0xff] %v130
    %133 = vst [vmem:[#allocation2 + $0x8] sm:$0xff] %v131
    // Predicated region
    $region22: #{_linear_call.1} parent=1 // pred_check
      %p134 = pneg %p29
    $region23: #{_linear_call.1} parent=1 // pred_check_branch
      %136 = sbr.rel (%p134) target = $region25
    $region24: #{_linear_call.1} parent=1 // pred_region
      %v137 = vld [vmem:[#allocation2] sm:$0xff]
      %v138 = vld [vmem:[#allocation2 + $0x8] sm:$0xff]
      %v139 = vld [vmem:[%s2] sm:$0x1]
      %v141 = vlaneseq
      %v142 = vshrl.u32 %v141, 7
      %v143 = vsub.s32 0, %v142
      %v144 = vrot.slane %v139, %v143
      %v146 = vadd.f32 %v137, %v144
      %v147 = vadd.f32 %v138, %v144
      %148 = vst [vmem:[#allocation6] sm:$0xff] %v146
      %149 = vst [vmem:[#allocation6 + $0x8] sm:$0xff] %v147
    $region25: #{_linear_call.1} parent=1 // pred_fallthru
      _
    // Predicated region
    $region26: #{_linear_call.1} parent=1 // pred_check
      _
    $region27: #{_linear_call.1} parent=1 // pred_check_branch
      %151 = sbr.rel (0) target = $region29
    $region28: #{_linear_call.1} parent=1 // pred_region
      %s153 = ssub.s32 256, 256
      %154 = vsyncadd [#allocation5], %s153
      %s155 = sshll.u32 [#allocation6], 4
      %s156 = int_to_ptr.vmem [resolvable:$true] %s155
      %161 = dma.vmem_to_hbm [thread:$0]  %s156, 256, %s3, [#allocation5], 128, 128, 8
    $region29: #{_linear_call.1} parent=1 // pred_fallthru
      _
    // Predicated region
    $region30: #{_linear_call.1} parent=1 // pred_check
      _
    $region31: #{_linear_call.1} parent=1 // pred_check_branch
      %163 = sbr.rel (0) target = $region33
    $region32: #{_linear_call.1} parent=1 // pred_region
      %164 = dma.done [#allocation5], 256
    $region33: #{_linear_call.1} parent=1 // pred_fallthru
      _
    %165 = vsyncpa [#allocation4], 1
    %166 = vsyncpa [#allocation5], 1

</llo_original>
